<compile_context>
chip_gen: v7x
topology: tpu7x:2x2x1
jax: 0.10.0
libtpu: 0.0.40
codegen_flags: <defaults>
</compile_context>

<pallas_src>
import jax
import jax.numpy as jnp
from jax.experimental import pallas as pl
from jax.experimental.pallas import tpu as pltpu


def attention_kernel(x_ref, w_ref, o_ref):
    # x_ref: (TB, S, H) block of gru_out (native dtype, never copied to f32)
    # w_ref: (1, 1, H)  attention weight row (Linear(H -> 1) weight, lane-dense)
    # o_ref: (TB, H)    context output (lane-dense, no size-1 dims)
    x = x_ref[...]                                    # native dtype
    w = w_ref[...].astype(jnp.float32)                # (1, 1, H)

    # scores = <x, w> along H (VPU multiply, f32 accumulation).  keepdims keeps
    # the whole softmax in a (TB, S, 1) layout so the later x * attn is a lane
    # broadcast instead of a lane<->sublane relayout.
    # The Linear bias is omitted: softmax is shift-invariant, so a scalar bias
    # added to every score cancels exactly — result matches the PyTorch module.
    scores = jnp.sum(x.astype(jnp.float32) * w, axis=-1, keepdims=True)  # (TB,S,1)

    # softmax over the sequence axis (PyTorch dim=1).
    m = jnp.max(scores, axis=1, keepdims=True)        # (TB, 1, 1)
    e = jnp.exp(scores - m)                           # (TB, S, 1)
    denom = jnp.sum(e, axis=1, keepdims=True)         # (TB, 1, 1)
    attn = e / denom                                  # exact: meets f32 1e-5 tol

    # context = sum over seq of (gru_out * attn)      # (TB, H)
    context = jnp.sum(x.astype(jnp.float32) * attn, axis=1)
    o_ref[...] = context.astype(o_ref.dtype)


def _round_up(x, m):
    return ((x + m - 1) // m) * m


def _vmem_budget_bytes():
    """Per-chip scoped-VMEM budget (~70% of physical, capped), with a fallback
    that is safe even on v7x's 64 MiB/TC."""
    try:
        cap = int(pltpu.get_tpu_info().vmem_capacity_bytes)
    except Exception:
        cap = 64 << 20                    # conservative (v7x per-TC size)
    return min(int(cap * 0.7), 96 << 20)


def _pick_batch_tile(B, S, H, itemsize, target_block_bytes):
    """Pick TB rows per block so one *padded* input block is ~target bytes.

    Accounts for VMEM (sublane, lane) tiling: the lane dim pads to 128 and the
    sublane dim pads to the dtype granularity (f32: 8, bf16: 16, int8: 32), so
    with H=32 the real footprint is 4x the naive S*H*itemsize estimate.
    """
    sub = 8 * max(1, 4 // max(itemsize, 1))
    padded_row_bytes = _round_up(S, sub) * _round_up(H, 128) * itemsize
    tb = max(1, target_block_bytes // padded_row_bytes)
    if tb >= B:
        # One block covers the batch.  If the batch is big enough, still split
        # into two blocks so both v7x TensorCores get work (negligible cost on
        # single-TC v5e/v6e: ~0.35 us extra grid-step overhead).
        if B >= 16:
            return min(_round_up(pl.cdiv(B, 2), 8), B)
        return B
    return min(max(8, (tb // 8) * 8), B)


def attention_forward(gru_out, w, b=None):
    """gru_out: (B, S, H); w: Linear(H, 1) weight, shape (1, H), (H, 1) or (H,).
    `b` is accepted for API parity but unused: the pre-softmax scalar bias is a
    mathematical no-op (softmax shift invariance). Returns context (B, H)."""
    B, S, H = gru_out.shape
    w_row = jnp.reshape(w, (1, 1, H))

    budget = _vmem_budget_bytes()
    tb = _pick_batch_tile(B, S, H, gru_out.dtype.itemsize,
                          target_block_bytes=budget // 8)
    num_blocks = pl.cdiv(B, tb)           # trailing partial block handled by masking

    out = pl.pallas_call(
        attention_kernel,
        out_shape=jax.ShapeDtypeStruct((B, H), gru_out.dtype),
        grid_spec=pltpu.PrefetchScalarGridSpec(
            num_scalar_prefetch=0,
            grid=(num_blocks,),
            in_specs=[
                pl.BlockSpec((tb, S, H), lambda bi: (bi, 0, 0)),
                pl.BlockSpec((1, 1, H), lambda bi: (0, 0, 0)),
            ],
            out_specs=pl.BlockSpec((tb, H), lambda bi: (bi, 0)),
        ),
        compiler_params=pltpu.CompilerParams(
            dimension_semantics=("parallel",),
            vmem_limit_bytes=budget),
    )(gru_out, w_row)
    return out


def attention_reference(gru_out, w, b):
    # Exact PyTorch-module semantics (bias included).
    scores = jnp.einsum("bsh,h->bs", gru_out, jnp.reshape(w, (-1,)))[..., None] + b
    attn = jax.nn.softmax(scores, axis=1)
    return jnp.sum(gru_out * attn, axis=1)


if __name__ == "__main__":
    key = jax.random.PRNGKey(0)
    k_x, k_w, k_b = jax.random.split(key, 3)

    B, S, H = 2, 8, 32   # batch, seq, hidden_dim

    gru_out = jax.random.normal(k_x, (B, S, H), dtype=jnp.float32)
    # nn.Linear(hidden_dim, 1): weight (1, H), bias (1,)
    bound = 1.0 / (H ** 0.5)
    w = jax.random.uniform(k_w, (1, H), dtype=jnp.float32, minval=-bound, maxval=bound)
    b = jax.random.uniform(k_b, (1,), dtype=jnp.float32, minval=-bound, maxval=bound)

    ctx = attention_forward(gru_out, w, b)
    jax.block_until_ready(ctx)

    ref = attention_reference(gru_out, w, b)
    assert ctx.shape == (B, H)
    assert jnp.allclose(ctx, ref, atol=1e-5, rtol=1e-5)
    print("KERNEL_OK")
</pallas_src>

<mosaic_0001>
module attributes {stable_mosaic.version = 11 : i64} {
  func.func @attention_kernel(%arg0: i32, %arg1: memref<2x8x32xf32, #tpu.memory_space<vmem>>, %arg2: memref<1x1x32xf32, #tpu.memory_space<vmem>>, %arg3: memref<2x32xf32, #tpu.memory_space<vmem>>) attributes {dimension_semantics = [#tpu.dimension_semantics<parallel>], iteration_bounds = array<i64: 1>, scalar_prefetch = 0 : i64, scratch_operands = 0 : i64, tpu.core_type = #tpu.core_type<tc>, window_params = [{transform_indices = @transform_0, window_bounds = array<i64: 2, 8, 32>}, {pipeline_mode = #tpu.pipeline_mode<synchronous>, transform_indices = @transform_1, window_bounds = array<i64: 1, 1, 32>}, {transform_indices = @transform_2, window_bounds = array<i64: 2, 32>}]} {
    %c0 = arith.constant 0 : index
    %c0_0 = arith.constant 0 : index
    %c0_1 = arith.constant 0 : index
    %0 = vector.load %arg1[%c0, %c0_0, %c0_1] : memref<2x8x32xf32, #tpu.memory_space<vmem>>, vector<2x8x32xf32>
    %c0_2 = arith.constant 0 : index
    %c0_3 = arith.constant 0 : index
    %c0_4 = arith.constant 0 : index
    %1 = vector.load %arg2[%c0_2, %c0_3, %c0_4] : memref<1x1x32xf32, #tpu.memory_space<vmem>>, vector<1x1x32xf32>
    %2 = vector.broadcast %1 : vector<1x1x32xf32> to vector<2x8x32xf32>
    %3 = arith.mulf %0, %2 : vector<2x8x32xf32>
    %cst = arith.constant dense<0.000000e+00> : vector<2x8xf32>
    %4 = vector.multi_reduction <add>, %3, %cst [2] : vector<2x8x32xf32> to vector<2x8xf32>
    %5 = vector.shape_cast %4 : vector<2x8xf32> to vector<2x8x1xf32>
    %cst_5 = arith.constant dense<0xFF800000> : vector<2x1xf32>
    %6 = vector.multi_reduction <maximumf>, %5, %cst_5 [1] : vector<2x8x1xf32> to vector<2x1xf32>
    %7 = vector.shape_cast %6 : vector<2x1xf32> to vector<2x1x1xf32>
    %8 = vector.broadcast %7 : vector<2x1x1xf32> to vector<2x8x1xf32>
    %9 = arith.subf %5, %8 : vector<2x8x1xf32>
    %10 = math.exp %9 : vector<2x8x1xf32>
    %cst_6 = arith.constant dense<0.000000e+00> : vector<2x1xf32>
    %11 = vector.multi_reduction <add>, %10, %cst_6 [1] : vector<2x8x1xf32> to vector<2x1xf32>
    %12 = vector.shape_cast %11 : vector<2x1xf32> to vector<2x1x1xf32>
    %13 = vector.broadcast %12 : vector<2x1x1xf32> to vector<2x8x1xf32>
    %14 = arith.divf %10, %13 : vector<2x8x1xf32>
    %15 = vector.broadcast %14 : vector<2x8x1xf32> to vector<2x8x32xf32>
    %16 = arith.mulf %0, %15 : vector<2x8x32xf32>
    %cst_7 = arith.constant dense<0.000000e+00> : vector<2x32xf32>
    %17 = vector.multi_reduction <add>, %16, %cst_7 [1] : vector<2x8x32xf32> to vector<2x32xf32>
    %c0_8 = arith.constant 0 : index
    %c0_9 = arith.constant 0 : index
    %18 = vector.load %arg3[%c0_8, %c0_9] : memref<2x32xf32, #tpu.memory_space<vmem>>, vector<2x32xf32>
    tpu.vector_store %arg3[%c0_8, %c0_9], %17 {strides = array<i32>} : memref<2x32xf32, #tpu.memory_space<vmem>>, vector<2x32xf32>,
    return
  }
  func.func @transform_0(%arg0: i32) -> (i32, i32, i32) {
    %c0_i32 = arith.constant 0 : i32
    %c0_i32_0 = arith.constant 0 : i32
    %c0_i32_1 = arith.constant 0 : i32
    return %arg0, %c0_i32, %c0_i32_0 : i32, i32, i32
  }
  func.func @transform_1(%arg0: i32) -> (i32, i32, i32) {
    %c0_i32 = arith.constant 0 : i32
    %c0_i32_0 = arith.constant 0 : i32
    %c0_i32_1 = arith.constant 0 : i32
    %c0_i32_2 = arith.constant 0 : i32
    return %c0_i32, %c0_i32_0, %c0_i32_1 : i32, i32, i32
  }
  func.func @transform_2(%arg0: i32) -> (i32, i32) {
    %c0_i32 = arith.constant 0 : i32
    %c0_i32_0 = arith.constant 0 : i32
    return %arg0, %c0_i32 : i32, i32
  }
}

</mosaic_0001>

<llo_original>
// kernel: tpu_custom_call.1
$region0: #{tpu_custom_call.1}
  #allocation0 [shape = 'u32[]', space=smem, size = 0x4, offset = 0x4, fixed_abs, tag = 'smem constant byte address 0x4 - core index']
  #allocation1 [shape = 'u32[144,128]{1,0:T(1,128)}', space=vmem, size = 0x12000, scoped, tag = 'internal scratch']
  %s0 = inlined_call_operand.hbm [shape: f32[2,8,32], index: 0, kind: input, shape index: {}]
  %s1 = inlined_call_operand.vmem [shape: f32[1,1,32], index: 1, kind: input, shape index: {}]
  %s2 = inlined_call_operand.hbm [shape: f32[2,32], index: 2, kind: output, shape index: {}]
  %s3 = sld [smem:[#allocation0]]
  $region22: #{tpu_custom_call.1} parent=0
    _
  %s5 = ssub.s32 1, %s3
  %s6 = scalar_select 0, %s5, %s3
  $region1: #{tpu_custom_call.1} parent=0
    #allocation2 [shape = 'u8[8192]{0}', space=vmem, size = 0x2000, scoped, tag = 'input window, operand 0, single buffered']
    #allocation3 [shape = 's32[1]{0}', space=sflag, size = 0x4, scoped, tag = 'scoped memory for tpu_custom_call.1']
    #allocation4 [shape = 's32[1]{0}', space=sflag, size = 0x4, scoped, tag = 'scoped memory for tpu_custom_call.1']
    #allocation5 [shape = 'u8[1024]{0}', space=vmem, size = 0x400, scoped, tag = 'output window, operand 0, single buffered']
    %7 = vsyncpa [#allocation3], 0
    %8 = vsyncpa [#allocation4], 0
    // Predicated region
    $region2: #{tpu_custom_call.1} parent=1 // pred_check
      _
    $region3: #{tpu_custom_call.1} parent=1 // pred_check_branch
      %10 = sbr.rel (0) target = $region5
    $region4: #{tpu_custom_call.1} parent=1 // pred_region
      %s12 = ssub.s32 256, 256
      %13 = vsyncadd [#allocation3], %s12
      %s14 = sshll.u32 [#allocation2], 4
      %s15 = int_to_ptr.vmem [resolvable:$true] %s14
      %20 = dma.hbm_to_vmem [thread:$0]  %s0, 256, %s15, [#allocation3], 128, 128, 8
    $region5: #{tpu_custom_call.1} parent=1 // pred_fallthru
      _
    // Predicated region
    $region6: #{tpu_custom_call.1} parent=1 // pred_check
      _
    $region7: #{tpu_custom_call.1} parent=1 // pred_check_branch
      %22 = sbr.rel (0) target = $region9
    $region8: #{tpu_custom_call.1} parent=1 // pred_region
      _
    $region9: #{tpu_custom_call.1} parent=1 // pred_fallthru
      _
    // Predicated region
    $region10: #{tpu_custom_call.1} parent=1 // pred_check
      _
    $region11: #{tpu_custom_call.1} parent=1 // pred_check_branch
      %24 = sbr.rel (0) target = $region13
    $region12: #{tpu_custom_call.1} parent=1 // pred_region
      %25 = dma.done [#allocation3], 256
    $region13: #{tpu_custom_call.1} parent=1 // pred_fallthru
      _
    %v26 = vld [vmem:[#allocation2] sm:$0xff]
    %v27 = vld [vmem:[#allocation2 + $0x8] sm:$0xff]
    %v28 = vld [vmem:[%s1] sm:$0x1]
    %v30 = vlaneseq
    %v31 = vshrl.u32 %v30, 7
    %v32 = vsub.s32 0, %v31
    %v33 = vrot.slane %v28, %v32
    %v35 = vmul.f32 %v26, %v33
    %v36 = vmul.f32 %v27, %v33
    %vm37 = vcmask 261120
    %v38 = vsel %vm37, %v35, 0.0
    %39 = vadd.xlane.f32.xlu0 %v38
    %v40 = vpop.xlane.xlu0 %39
    %v41 = vsel %vm37, %v36, 0.0
    %42 = vadd.xlane.f32.xlu0 %v41
    %v43 = vpop.xlane.xlu0 %42
    %v44 = vrot.slane %v40, 4
    %v45 = vmax.f32 %v40, %v44
    %v46 = vrot.slane %v45, 2
    %v47 = vmax.f32 %v45, %v46
    %v48 = vrot.slane %v47, 1
    %v49 = vmax.f32 %v47, %v48
    %v50 = vrot.slane %v43, 4
    %v51 = vmax.f32 %v43, %v50
    %v52 = vrot.slane %v51, 2
    %v53 = vmax.f32 %v51, %v52
    %v54 = vrot.slane %v53, 1
    %v55 = vmax.f32 %v53, %v54
    %v56 = vsub.f32 %v40, %v49
    %v57 = vsub.f32 %v43, %v55
    %v58 = vmul.f32 %v56, 1.442695
    %v59 = vpow.pop %v58
    %v60 = vmul.f32 %v57, 1.442695
    %v61 = vpow.pop %v60
    %v62 = vrot.slane %v59, 4
    %v63 = vadd.f32 %v59, %v62
    %v64 = vrot.slane %v63, 2
    %v65 = vadd.f32 %v63, %v64
    %v66 = vrot.slane %v65, 1
    %v67 = vadd.f32 %v65, %v66
    %v68 = vrot.slane %v61, 4
    %v69 = vadd.f32 %v61, %v68
    %v70 = vrot.slane %v69, 2
    %v71 = vadd.f32 %v69, %v70
    %v72 = vrot.slane %v71, 1
    %v73 = vadd.f32 %v71, %v72
    %v74 = vrcp.pop %v67
    %v75 = vmul.f32 %v59, %v74
    %v76 = vrcp.pop %v73
    %v77 = vmul.f32 %v61, %v76
    %v78 = vmul.f32 %v26, %v75
    %v79 = vmul.f32 %v27, %v77
    %v80 = vsel %vm37, %v78, 0.0
    %v81 = vrot.slane %v80, 4
    %v82 = vadd.f32 %v80, %v81
    %v83 = vrot.slane %v82, 2
    %v84 = vadd.f32 %v82, %v83
    %v85 = vrot.slane %v84, 1
    %v86 = vadd.f32 %v84, %v85
    %v87 = vsel %vm37, %v79, 0.0
    %v88 = vrot.slane %v87, 4
    %v89 = vadd.f32 %v87, %v88
    %v90 = vrot.slane %v89, 2
    %v91 = vadd.f32 %v89, %v90
    %v92 = vrot.slane %v91, 1
    %v93 = vadd.f32 %v91, %v92
    %vm96 = vcmask 1041409
    %v97 = vsel %vm96, %v93, %v86
    %vm99 = vcmask 254976
    %100 = vst.msk [vmem:[#allocation5] sm:$0x3] %vm99, %v97
    // Predicated region
    $region14: #{tpu_custom_call.1} parent=1 // pred_check
      _
    $region15: #{tpu_custom_call.1} parent=1 // pred_check_branch
      %102 = sbr.rel (0) target = $region17
    $region16: #{tpu_custom_call.1} parent=1 // pred_region
      %s104 = ssub.s32 32, 32
      %105 = vsyncadd [#allocation4], %s104
      %s107 = sshll.u32 [#allocation5], 4
      %s108 = int_to_ptr.vmem [resolvable:$true] %s107
      %110 = dma.vmem_to_hbm [thread:$0]  %s108, 32, %s2, [#allocation4]
    $region17: #{tpu_custom_call.1} parent=1 // pred_fallthru
      _
    // Predicated region
    $region18: #{tpu_custom_call.1} parent=1 // pred_check
      _
    $region19: #{tpu_custom_call.1} parent=1 // pred_check_branch
      %112 = sbr.rel (0) target = $region21
    $region20: #{tpu_custom_call.1} parent=1 // pred_region
      %113 = dma.done [#allocation4], 32
    $region21: #{tpu_custom_call.1} parent=1 // pred_fallthru
      _
    %114 = vsyncpa [#allocation3], 1
    %115 = vsyncpa [#allocation4], 1

</llo_original>
